<compile_context>
chip_gen: v5e
topology: v5e:2x2
jax: 0.10.0
libtpu: 0.0.40
codegen_flags: <defaults>
</compile_context>

<pallas_src>
import jax
import jax.numpy as jnp
from jax import lax
from jax.experimental import pallas as pl
from jax.experimental.pallas import tpu as pltpu

LANE = 128


def _round_up(x, m):
    return ((x + m - 1) // m) * m


def _pad_last(x, target):
    cur = x.shape[-1]
    if cur == target:
        return x
    pad = [(0, 0)] * (x.ndim - 1) + [(0, target - cur)]
    return jnp.pad(x, pad)


# ----------------------------------------------------------------------------
# Kernel 1: embedder projection   y = tanh(x @ W + b)   (row-tiled)
# ----------------------------------------------------------------------------
def _embed_proj_kernel(x_ref, w_ref, b_ref, o_ref):
    x = x_ref[...]                                    # (TILE_N, D) bf16
    w = w_ref[...]                                    # (D, H)      bf16
    b = b_ref[...]                                    # (1, H)      f32
    y = jnp.dot(x, w, preferred_element_type=jnp.float32) + b
    o_ref[...] = jnp.tanh(y)                          # tanh / bias in f32


def embed_project(x2d: jax.Array, w: jax.Array, b: jax.Array,
                  *, tile_n: int = 512) -> jax.Array:
    """x2d: (N, D) f32, w: (D, H), b: (H,) -> (N, H) f32.

    Row-tiled: grid over N so BlockSpec double-buffering overlaps HBM DMA with
    MXU work; W and b use a constant block index and stay VMEM-resident.
    tile_n=512 keeps the working set (2 bufs * tile * (D+H) bytes) far below
    the 32 MiB default scoped VMEM limit on v7x (64 MiB physical).
    """
    N, D = x2d.shape
    H = w.shape[1]
    # bf16 packs 16 rows per sublane group -> keep tile a multiple of 16.
    tile_n = min(tile_n, _round_up(N, 16))
    n_pad = _round_up(N, tile_n)

    xb = x2d.astype(jnp.bfloat16)
    if n_pad != N:
        xb = jnp.pad(xb, ((0, n_pad - N), (0, 0)))
    wb = w.astype(jnp.bfloat16)
    b2 = b.reshape(1, H).astype(jnp.float32)

    out = pl.pallas_call(
        _embed_proj_kernel,
        out_shape=jax.ShapeDtypeStruct((n_pad, H), jnp.float32),
        grid=(n_pad // tile_n,),
        in_specs=[
            pl.BlockSpec((tile_n, D), lambda i: (i, 0)),
            pl.BlockSpec((D, H), lambda i: (0, 0)),      # VMEM-resident
            pl.BlockSpec((1, H), lambda i: (0, 0)),      # VMEM-resident
        ],
        out_specs=pl.BlockSpec((tile_n, H), lambda i: (i, 0)),
        compiler_params=pltpu.CompilerParams(
            dimension_semantics=("parallel",)),
    )(xb, wb, b2)
    return out[:N]


# ----------------------------------------------------------------------------
# Kernel 2: prototypical head (batched over several batch elements per step)
#   prototypes = (mask-folded one-hot targets)^T @ support_reps / counts
#   scores     = test_reps @ prototypes^T
# Label axis is pre-padded to a multiple of 128 for lane-dense stores; the
# support mask is already folded into the one-hot targets upstream.
# ----------------------------------------------------------------------------
def _proto_score_kernel(sup_ref, tgt_ref, test_ref, o_ref):
    sup = sup_ref[...]                                # (Bb, Ns, H)  bf16
    tgt = tgt_ref[...]                                # (Bb, Ns, Tp) bf16
    test = test_ref[...]                              # (Bb, Lt, H)  bf16

    counts = jnp.sum(tgt.astype(jnp.float32), axis=1)          # (Bb, Tp)
    # prototypes: contract over the support axis (batched, no transpose).
    protos = lax.dot_general(
        tgt, sup, (((1,), (1,)), ((0,), (0,))),
        preferred_element_type=jnp.float32)                     # (Bb, Tp, H)
    inv = pl.reciprocal(counts + 1e-6, approx=True)             # EUP slot
    protos = protos * inv[:, :, None]

    scores = lax.dot_general(
        test, protos.astype(jnp.bfloat16),
        (((2,), (2,)), ((0,), (0,))),
        preferred_element_type=jnp.float32)                     # (Bb, Lt, Tp)
    o_ref[...] = scores


def proto_scores(sup_reps, sup_tgt_masked, test_reps, *, b_blk: int = 8):
    """
    sup_reps       : (B, Ns, H)  f32   support representations (flattened)
    sup_tgt_masked : (B, Ns, Tp) f32   one-hot targets * support mask,
                                       label axis padded to a multiple of 128
    test_reps      : (B, Lt, H)  f32   test representations
    returns        : (B, Lt, Tp) f32   similarity scores
    """
    B, Ns, H = sup_reps.shape
    Tp = sup_tgt_masked.shape[-1]
    Lt = test_reps.shape[1]

    b_blk = min(b_blk, B)
    b_pad = _round_up(B, b_blk)

    sup_b = sup_reps.astype(jnp.bfloat16)
    tgt_b = sup_tgt_masked.astype(jnp.bfloat16)
    test_b = test_reps.astype(jnp.bfloat16)
    if b_pad != B:
        pad = b_pad - B
        sup_b = jnp.pad(sup_b, ((0, pad), (0, 0), (0, 0)))
        tgt_b = jnp.pad(tgt_b, ((0, pad), (0, 0), (0, 0)))
        test_b = jnp.pad(test_b, ((0, pad), (0, 0), (0, 0)))

    out = pl.pallas_call(
        _proto_score_kernel,
        out_shape=jax.ShapeDtypeStruct((b_pad, Lt, Tp), jnp.float32),
        grid=(b_pad // b_blk,),
        in_specs=[
            pl.BlockSpec((b_blk, Ns, H), lambda i: (i, 0, 0)),
            pl.BlockSpec((b_blk, Ns, Tp), lambda i: (i, 0, 0)),
            pl.BlockSpec((b_blk, Lt, H), lambda i: (i, 0, 0)),
        ],
        out_specs=pl.BlockSpec((b_blk, Lt, Tp), lambda i: (i, 0, 0)),
        compiler_params=pltpu.CompilerParams(
            dimension_semantics=("parallel",)),
    )(sup_b, tgt_b, test_b)
    return out[:B]


# ----------------------------------------------------------------------------
# Synthetic context embedder + FewShotLearner (eval / decode path)
# ----------------------------------------------------------------------------
class FewShotLearnerJAX:
    def __init__(self, vocab_size=32, emb_dim=32, hidden=32, tasks=("sl", "sc"),
                 seed=0):
        self.tasks = tasks
        self.hidden = hidden
        k = jax.random.PRNGKey(seed)
        k_tok, k_seg, k_w, k_b = jax.random.split(k, 4)
        # deterministic parameter init (synthetic; not a checkpoint load)
        self.tok_emb = jax.random.normal(k_tok, (vocab_size, emb_dim),
                                         jnp.float32) * 0.1
        self.seg_emb = jax.random.normal(k_seg, (2, emb_dim), jnp.float32) * 0.1
        self.proj_w = jax.random.normal(k_w, (emb_dim, hidden),
                                        jnp.float32) * 0.1
        self.proj_b = jax.random.normal(k_b, (hidden,), jnp.float32) * 0.01

    # --- context embedder -------------------------------------------------
    def _features(self, token_ids, segment_ids, input_mask):
        x = self.tok_emb[token_ids] + self.seg_emb[segment_ids]   # (..., L, D)
        return x * input_mask[..., None].astype(jnp.float32)

    def get_context_reps(self, test_token_ids, test_segment_ids, test_nwp_index,
                         test_input_mask, support_token_ids, support_segment_ids,
                         support_nwp_index, support_input_mask):
        x_test = self._features(test_token_ids, test_segment_ids,
                                test_input_mask)                  # (B, Lt, D)
        x_sup = self._features(support_token_ids, support_segment_ids,
                               support_input_mask)                # (B, S, Ls, D)
        D = x_test.shape[-1]
        n_test = x_test.size // D

        # Single projection pallas_call for test + support (merged rows).
        x_all = jnp.concatenate(
            [x_test.reshape(-1, D), x_sup.reshape(-1, D)], axis=0)
        reps_all = embed_project(x_all, self.proj_w, self.proj_b)  # (N, H)

        H = self.hidden
        reps_test = reps_all[:n_test].reshape(x_test.shape[:-1] + (H,))
        reps_sup = reps_all[n_test:].reshape(x_sup.shape[:-1] + (H,))

        # gather non-wordpiece positions for the sequence-labeling reps
        seq_test = jnp.take_along_axis(reps_test, test_nwp_index[..., None],
                                       axis=-2)
        seq_sup = jnp.take_along_axis(reps_sup, support_nwp_index[..., None],
                                      axis=-2)
        # sentence-level reps: first ([CLS]) position
        tc_test = reps_test[..., 0, :]
        tc_sup = reps_sup[..., 0, :]
        return seq_test, seq_sup, tc_test, tc_sup

    # --- forward (eval: returns prediction_map) ---------------------------
    def forward(self, test_token_ids, test_segment_ids, test_nwp_index,
                test_input_mask, test_output_mask_map,
                support_token_ids, support_segment_ids, support_nwp_index,
                support_input_mask, support_output_mask_map,
                test_target_map, support_target_map, support_num):
        seq_test, seq_support, tc_test, tc_support = self.get_context_reps(
            test_token_ids, test_segment_ids, test_nwp_index, test_input_mask,
            support_token_ids, support_segment_ids, support_nwp_index,
            support_input_mask)
        # TODO(synk): training path (loss from the original task heads) is tied
        # to unspecified submodules; only the eval/decode (prototypical) path
        # is built.
        prediction_map = {}
        for task in self.tasks:
            if task == "sl":
                B, S, Ls, H = seq_support.shape
                T = support_target_map["sl"].shape[-1]
                Tp = _round_up(T, LANE)
                sup_reps = seq_support.reshape(B, S * Ls, H)
                sup_mask = support_output_mask_map["sl"].reshape(
                    B, S * Ls, 1).astype(jnp.float32)
                # fold the support mask into the one-hot, pad labels to 128
                sup_tgt = support_target_map["sl"].reshape(
                    B, S * Ls, T).astype(jnp.float32) * sup_mask
                sup_tgt = _pad_last(sup_tgt, Tp)
                scores = proto_scores(sup_reps, sup_tgt, seq_test)  # (B,Lt,Tp)
                scores = scores[..., :T]                            # drop pad
                pred = jnp.argmax(scores, axis=-1)                  # (B, Lt)
                tm = test_output_mask_map["sl"].astype(jnp.int32)
                prediction_map[task] = jnp.where(tm > 0, pred, 0)
            elif task == "sc":
                B, S, H = tc_support.shape
                C = support_target_map["sc"].shape[-1]
                Cp = _round_up(C, LANE)
                sup_mask = support_output_mask_map["sc"].reshape(
                    B, S, 1).astype(jnp.float32)
                sup_tgt = support_target_map["sc"].astype(
                    jnp.float32) * sup_mask
                sup_tgt = _pad_last(sup_tgt, Cp)
                test_reps = tc_test[:, None, :]                     # (B, 1, H)
                scores = proto_scores(tc_support, sup_tgt,
                                      test_reps)                    # (B, 1, Cp)
                scores = scores[:, 0, :C]
                pred = jnp.argmax(scores, axis=-1)                  # (B,)
                tm = test_output_mask_map["sc"].reshape(B).astype(jnp.int32)
                prediction_map[task] = jnp.where(tm > 0, pred, 0)
            else:
                raise ValueError(task)
        return prediction_map


# ----------------------------------------------------------------------------
# Demo
# ----------------------------------------------------------------------------
if __name__ == "__main__":
    B, Lt = 2, 8          # batch, test_len
    S, Ls = 4, 8          # support_size, support_len
    V = 32                # vocab
    NUM_TAGS = 8          # 'sl' label set size
    NUM_CLS = 4           # 'sc' class count

    key = jax.random.PRNGKey(0)
    ks = jax.random.split(key, 8)

    test_token_ids = jax.random.randint(ks[0], (B, Lt), 0, V)
    test_segment_ids = jnp.zeros((B, Lt), jnp.int32)
    test_nwp_index = jnp.tile(jnp.arange(Lt, dtype=jnp.int32), (B, 1))
    test_input_mask = jnp.ones((B, Lt), jnp.int32)
    test_output_mask_map = {
        "sl": jnp.ones((B, Lt), jnp.int32),
        "sc": jnp.ones((B, 1), jnp.int32),
    }

    support_token_ids = jax.random.randint(ks[1], (B, S, Ls), 0, V)
    support_segment_ids = jnp.zeros((B, S, Ls), jnp.int32)
    support_nwp_index = jnp.tile(jnp.arange(Ls, dtype=jnp.int32), (B, S, 1))
    support_input_mask = jnp.ones((B, S, Ls), jnp.int32)
    support_output_mask_map = {
        "sl": jnp.ones((B, S, Ls), jnp.int32),
        "sc": jnp.ones((B, S), jnp.int32),
    }

    test_target_map = {
        "sl": jax.random.randint(ks[2], (B, Lt), 0, NUM_TAGS),
        "sc": jax.random.randint(ks[3], (B,), 0, NUM_CLS),
    }
    sl_sup_labels = jax.random.randint(ks[4], (B, S, Ls), 0, NUM_TAGS)
    sc_sup_labels = jax.random.randint(ks[5], (B, S), 0, NUM_CLS)
    support_target_map = {
        "sl": jax.nn.one_hot(sl_sup_labels, NUM_TAGS, dtype=jnp.float32),
        "sc": jax.nn.one_hot(sc_sup_labels, NUM_CLS, dtype=jnp.float32),
    }
    support_num = jnp.full((B, 1), S, jnp.int32)

    model = FewShotLearnerJAX(vocab_size=V, emb_dim=32, hidden=32,
                              tasks=("sl", "sc"), seed=0)

    preds = model.forward(
        test_token_ids, test_segment_ids, test_nwp_index, test_input_mask,
        test_output_mask_map, support_token_ids, support_segment_ids,
        support_nwp_index, support_input_mask, support_output_mask_map,
        test_target_map, support_target_map, support_num)

    jax.block_until_ready(preds)
    assert preds["sl"].shape == (B, Lt)
    assert preds["sc"].shape == (B,)
    print("KERNEL_OK")
</pallas_src>

<mosaic_0001>
module attributes {stable_mosaic.version = 11 : i64} {
  func.func @_embed_proj_kernel(%arg0: i32, %arg1: memref<80x32xbf16, #tpu.memory_space<vmem>>, %arg2: memref<32x32xbf16, #tpu.memory_space<vmem>>, %arg3: memref<1x32xf32, #tpu.memory_space<vmem>>, %arg4: memref<80x32xf32, #tpu.memory_space<vmem>>) attributes {dimension_semantics = [#tpu.dimension_semantics<parallel>], iteration_bounds = array<i64: 1>, scalar_prefetch = 0 : i64, scratch_operands = 0 : i64, tpu.core_type = #tpu.core_type<tc>, window_params = [{transform_indices = @transform_0, window_bounds = array<i64: 80, 32>}, {pipeline_mode = #tpu.pipeline_mode<synchronous>, transform_indices = @transform_1, window_bounds = array<i64: 32, 32>}, {pipeline_mode = #tpu.pipeline_mode<synchronous>, transform_indices = @transform_2, window_bounds = array<i64: 1, 32>}, {transform_indices = @transform_3, window_bounds = array<i64: 80, 32>}]} {
    %c0 = arith.constant 0 : index
    %c0_0 = arith.constant 0 : index
    %0 = vector.load %arg1[%c0, %c0_0] : memref<80x32xbf16, #tpu.memory_space<vmem>>, vector<80x32xbf16>
    %c0_1 = arith.constant 0 : index
    %c0_2 = arith.constant 0 : index
    %1 = vector.load %arg2[%c0_1, %c0_2] : memref<32x32xbf16, #tpu.memory_space<vmem>>, vector<32x32xbf16>
    %c0_3 = arith.constant 0 : index
    %c0_4 = arith.constant 0 : index
    %2 = vector.load %arg3[%c0_3, %c0_4] : memref<1x32xf32, #tpu.memory_space<vmem>>, vector<1x32xf32>
    %cst = arith.constant dense<0.000000e+00> : vector<80x32xf32>
    %3 = tpu.matmul %0, %1, %cst {dimension_numbers = #tpu.dot_dimension_numbers<[1], [0], [0], [1], [0, 0, 1, 1], [], []>} : vector<80x32xbf16>, vector<32x32xbf16>, vector<80x32xf32> -> vector<80x32xf32>
    %4 = vector.broadcast %2 : vector<1x32xf32> to vector<80x32xf32>
    %5 = arith.addf %3, %4 : vector<80x32xf32>
    %6 = math.tanh %5 : vector<80x32xf32>
    %c0_5 = arith.constant 0 : index
    %c0_6 = arith.constant 0 : index
    %7 = vector.load %arg4[%c0_5, %c0_6] : memref<80x32xf32, #tpu.memory_space<vmem>>, vector<80x32xf32>
    tpu.vector_store %arg4[%c0_5, %c0_6], %6 {strides = array<i32>} : memref<80x32xf32, #tpu.memory_space<vmem>>, vector<80x32xf32>,
    return
  }
  func.func @transform_0(%arg0: i32) -> (i32, i32) {
    %c0_i32 = arith.constant 0 : i32
    %c0_i32_0 = arith.constant 0 : i32
    return %arg0, %c0_i32 : i32, i32
  }
  func.func @transform_1(%arg0: i32) -> (i32, i32) {
    %c0_i32 = arith.constant 0 : i32
    %c0_i32_0 = arith.constant 0 : i32
    %c0_i32_1 = arith.constant 0 : i32
    return %c0_i32, %c0_i32_0 : i32, i32
  }
  func.func @transform_2(%arg0: i32) -> (i32, i32) {
    %c0_i32 = arith.constant 0 : i32
    %c0_i32_0 = arith.constant 0 : i32
    %c0_i32_1 = arith.constant 0 : i32
    return %c0_i32, %c0_i32_0 : i32, i32
  }
  func.func @transform_3(%arg0: i32) -> (i32, i32) {
    %c0_i32 = arith.constant 0 : i32
    %c0_i32_0 = arith.constant 0 : i32
    return %arg0, %c0_i32 : i32, i32
  }
}

</mosaic_0001>

<llo_original>
// kernel: tpu_custom_call.1
$region0: #{tpu_custom_call.1}
  #allocation0 [shape = 'u32[]', space=smem, size = 0x4, offset = 0x4, fixed_abs, tag = 'smem constant byte address 0x4 - core index']
  #allocation1 [shape = 'u32[72,128]{1,0:T(1,128)}', space=vmem, size = 0x9000, scoped, tag = 'internal scratch']
  %s0 = inlined_call_operand.vmem [shape: bf16[80,32], index: 0, kind: input, shape index: {}]
  %s1 = inlined_call_operand.vmem [shape: bf16[32,32], index: 1, kind: input, shape index: {}]
  %s2 = inlined_call_operand.vmem [shape: f32[1,32], index: 2, kind: input, shape index: {}]
  %s3 = inlined_call_operand.vmem [shape: f32[80,32], index: 3, kind: output, shape index: {}]
  %s4 = sld [smem:[#allocation0]]
  $region22: #{tpu_custom_call.1} parent=0
    _
  %s6 = ssub.s32 1, %s4
  %s7 = scalar_select 0, %s6, %s4
  // Predicated region
  $region2: #{tpu_custom_call.1} parent=0 // pred_check
    _
  $region3: #{tpu_custom_call.1} parent=0 // pred_check_branch
    %9 = sbr.rel (0) target = $region5
  $region4: #{tpu_custom_call.1} parent=0 // pred_region
    _
  $region5: #{tpu_custom_call.1} parent=0 // pred_fallthru
    _
  // Predicated region
  $region6: #{tpu_custom_call.1} parent=0 // pred_check
    _
  $region7: #{tpu_custom_call.1} parent=0 // pred_check_branch
    %11 = sbr.rel (0) target = $region9
  $region8: #{tpu_custom_call.1} parent=0 // pred_region
    _
  $region9: #{tpu_custom_call.1} parent=0 // pred_fallthru
    _
  // Predicated region
  $region10: #{tpu_custom_call.1} parent=0 // pred_check
    _
  $region11: #{tpu_custom_call.1} parent=0 // pred_check_branch
    %13 = sbr.rel (0) target = $region13
  $region12: #{tpu_custom_call.1} parent=0 // pred_region
    _
  $region13: #{tpu_custom_call.1} parent=0 // pred_fallthru
    _
  %v15 = vld [vmem:[%s0] sm:$0xf]
  %v16 = vld [vmem:[%s0 + $0x4] sm:$0xf]
  %v17 = vld [vmem:[%s0 + $0x8] sm:$0xf]
  %v18 = vld [vmem:[%s0 + $0xc] sm:$0xf]
  %v19 = vld [vmem:[%s0 + $0x10] sm:$0xf]
  %v20 = vld [vmem:[%s0 + $0x14] sm:$0xf]
  %v21 = vld [vmem:[%s0 + $0x18] sm:$0xf]
  %v22 = vld [vmem:[%s0 + $0x1c] sm:$0xf]
  %v23 = vld [vmem:[%s0 + $0x20] sm:$0xf]
  %v24 = vld [vmem:[%s0 + $0x24] sm:$0xf]
  %v25 = vld [vmem:[%s1] sm:$0xf]
  %v26 = vld [vmem:[%s1 + $0x4] sm:$0xf]
  %v27 = vld [vmem:[%s1 + $0x8] sm:$0xf]
  %v28 = vld [vmem:[%s1 + $0xc] sm:$0xf]
  %v29 = vld [vmem:[%s2] sm:$0x1]
  %v31 = vperm.slane %v29, 0
  %v43 = vunpack.c.l.b16 %v15
  %v44 = vunpack.c.l.b16 %v16
  %v45 = vunpack.c.l.b16 %v17
  %v46 = vunpack.c.l.b16 %v18
  %v47 = vunpack.c.l.b16 %v19
  %v48 = vunpack.c.l.b16 %v20
  %v49 = vunpack.c.l.b16 %v21
  %v50 = vunpack.c.l.b16 %v22
  %v51 = vunpack.c.l.b16 %v23
  %v52 = vunpack.c.l.b16 %v24
  %v53 = vpack.c.b16 %v44, %v43
  %v54 = vpack.c.b16 %v46, %v45
  %v55 = vpack.c.b16 %v48, %v47
  %v56 = vpack.c.b16 %v50, %v49
  %v57 = vpack.c.b16 %v52, %v51
  %v62 = vunpack.c.l.b16 %v25
  %v63 = vunpack.c.l.b16 %v26
  %v64 = vunpack.c.l.b16 %v27
  %v65 = vunpack.c.l.b16 %v28
  %v66 = vpack.c.b16 %v63, %v62
  %v67 = vpack.c.b16 %v65, %v64
  %vm70 = vcmask 261120
  %v72 = vsel %vm70, %v53, 0
  %v75 = vsel %vm70, %v54, 0
  %v78 = vsel %vm70, %v55, 0
  %v81 = vsel %vm70, %v56, 0
  %v84 = vsel %vm70, %v57, 0
  %86 = vmatpush.bf16.msra.mxu0 0
  %87 = vmatpush.bf16.msra.mxu0 0
  %88 = vmatpush.bf16.msra.mxu0 0
  %89 = vmatpush.bf16.msra.mxu0 0
  %90 = vmatpush.bf16.msra.mxu0 0
  %91 = vmatpush.bf16.msra.mxu0 0
  %92 = vmatpush.bf16.msra.mxu0 %v67
  %93 = vmatpush.bf16.msra.mxu0 %v66
  %94 = vmatmul.bf16.gmra.mxu0 %v72
  %v95 = vpop.f32.mrf.mxu0
  %v96 = vadd.f32 %v31, %v95
  %v97 = vpop.f32.mrf.mxu0
  %v98 = vadd.f32 %v31, %v97
  %99 = vmatmul.bf16.gmra.mxu0 %v75
  %v100 = vpop.f32.mrf.mxu0
  %v101 = vadd.f32 %v31, %v100
  %v102 = vpop.f32.mrf.mxu0
  %v103 = vadd.f32 %v31, %v102
  %104 = vmatmul.bf16.gmra.mxu0 %v78
  %v105 = vpop.f32.mrf.mxu0
  %v106 = vadd.f32 %v31, %v105
  %v107 = vpop.f32.mrf.mxu0
  %v108 = vadd.f32 %v31, %v107
  %109 = vmatmul.bf16.gmra.mxu0 %v81
  %v110 = vpop.f32.mrf.mxu0
  %v111 = vadd.f32 %v31, %v110
  %v112 = vpop.f32.mrf.mxu0
  %v113 = vadd.f32 %v31, %v112
  %114 = vmatmul.bf16.gmra.mxu0 %v84
  %v115 = vpop.f32.mrf.mxu0
  %v116 = vadd.f32 %v31, %v115
  %v117 = vpop.f32.mrf.mxu0
  %v118 = vadd.f32 %v31, %v117
  %119 = vdwg.mxu0
  %v120 = vtanh.pop %v96
  %v121 = vtanh.pop %v98
  %v122 = vtanh.pop %v101
  %v123 = vtanh.pop %v103
  %v124 = vtanh.pop %v106
  %v125 = vtanh.pop %v108
  %v126 = vtanh.pop %v111
  %v127 = vtanh.pop %v113
  %v128 = vtanh.pop %v116
  %v129 = vtanh.pop %v118
  %130 = vst.msk [vmem:[%s3] sm:$0xff] %vm70, %v120
  %131 = vst.msk [vmem:[%s3 + $0x8] sm:$0xff] %vm70, %v121
  %132 = vst.msk [vmem:[%s3 + $0x10] sm:$0xff] %vm70, %v122
  %133 = vst.msk [vmem:[%s3 + $0x18] sm:$0xff] %vm70, %v123
  %134 = vst.msk [vmem:[%s3 + $0x20] sm:$0xff] %vm70, %v124
  %135 = vst.msk [vmem:[%s3 + $0x28] sm:$0xff] %vm70, %v125
  %136 = vst.msk [vmem:[%s3 + $0x30] sm:$0xff] %vm70, %v126
  %137 = vst.msk [vmem:[%s3 + $0x38] sm:$0xff] %vm70, %v127
  %138 = vst.msk [vmem:[%s3 + $0x40] sm:$0xff] %vm70, %v128
  %139 = vst.msk [vmem:[%s3 + $0x48] sm:$0xff] %vm70, %v129
  // Predicated region
  $region14: #{tpu_custom_call.1} parent=0 // pred_check
    _
  $region15: #{tpu_custom_call.1} parent=0 // pred_check_branch
    %141 = sbr.rel (0) target = $region17
  $region16: #{tpu_custom_call.1} parent=0 // pred_region
    _
  $region17: #{tpu_custom_call.1} parent=0 // pred_fallthru
    _
  // Predicated region
  $region18: #{tpu_custom_call.1} parent=0 // pred_check
    _
  $region19: #{tpu_custom_call.1} parent=0 // pred_check_branch
    %143 = sbr.rel (0) target = $region21
  $region20: #{tpu_custom_call.1} parent=0 // pred_region
    _
  $region21: #{tpu_custom_call.1} parent=0 // pred_fallthru
    _

</llo_original>
